<compile_context>
chip_gen: v7x
topology: tpu7x:2x2x1
jax: 0.10.0
libtpu: 0.0.40
codegen_flags: <defaults>
</compile_context>

<pallas_src>
import math

import jax
import jax.numpy as jnp
from jax import lax
from jax.experimental import pallas as pl
from jax.experimental.pallas import tpu as pltpu


# Conservative VMEM working budgets (bytes) that are safe on every generation
# (v7x: 64 MiB physical VMEM per TensorCore).
_VMEM_LIMIT = 40 * 1024 * 1024        # scoped-VMEM limit handed to Mosaic
_VMEM_BUDGET = 24 * 1024 * 1024       # what we let our buffers occupy
_FUSED_BUDGET = 16 * 1024 * 1024      # whole-problem-in-VMEM fast path
_RESIDENT_W_BUDGET = 12 * 1024 * 1024 # double-buffered resident weight


def _round_up(x, m):
    return (x + m - 1) // m * m


def _pick_tile(size, cap, align):
    """Largest multiple of `align` that divides `size` and is <= cap (>= align).

    Precondition: `size` is a positive multiple of `align`.
    """
    best = align
    t = align
    limit = min(cap, size)
    while t <= limit:
        if size % t == 0:
            best = t
        t += align
    return best


def _linear_dot(x, w):
    # y[m, n] = sum_k x[m, k] * w[n, k]  -- F.linear contraction, no transpose.
    return lax.dot_general(
        x, w, (((1,), (1,)), ((), ())), preferred_element_type=jnp.float32
    )


# ---------------------------------------------------------------------------
# Kernels
# ---------------------------------------------------------------------------
def _nac_weight_kernel(w_hat_ref, m_hat_ref, w_ref):
    # Elementwise: W = tanh(W_hat) * sigmoid(M_hat)   (EUP + VPU, streaming).
    w = jnp.tanh(w_hat_ref[...]) * jax.nn.sigmoid(m_hat_ref[...])
    w_ref[...] = w.astype(w_ref.dtype)


def _nac_fused_kernel(x_ref, w_hat_ref, m_hat_ref, o_ref):
    # Whole problem in VMEM: weight transform + matmul in one invocation.
    w = jnp.tanh(w_hat_ref[...]) * jax.nn.sigmoid(m_hat_ref[...])
    o_ref[...] = _linear_dot(x_ref[...], w).astype(o_ref.dtype)


def _nac_matmul_resident_kernel(x_ref, w_ref, o_ref):
    # 1-D grid over batch; w_ref block index is constant -> fetched once.
    o_ref[...] = _linear_dot(x_ref[...], w_ref[...]).astype(o_ref.dtype)


def _nac_matmul_tiled_f32_kernel(x_ref, w_ref, o_ref):
    # f32 output: accumulate directly into the resident output block.
    part = _linear_dot(x_ref[...], w_ref[...])

    @pl.when(pl.program_id(2) == 0)
    def _():
        o_ref[...] = part

    @pl.when(pl.program_id(2) > 0)
    def _():
        o_ref[...] += part


def _nac_matmul_tiled_acc_kernel(x_ref, w_ref, o_ref, acc_ref):
    # Non-f32 output: f32 VMEM scratch accumulator.
    @pl.when(pl.program_id(2) == 0)
    def _():
        acc_ref[...] = jnp.zeros_like(acc_ref)

    acc_ref[...] += _linear_dot(x_ref[...], w_ref[...])

    @pl.when(pl.program_id(2) == pl.num_programs(2) - 1)
    def _():
        o_ref[...] = acc_ref[...].astype(o_ref.dtype)


# ---------------------------------------------------------------------------
# Wrapper
# ---------------------------------------------------------------------------
def nac_forward(x, w_hat, m_hat, *, tm_cap=512, tn_cap=256, tk_cap=512,
                force_path=None):
    """NAC forward. x:(B, in_dim), W_hat/M_hat:(out_dim, in_dim) -> (B, out_dim)."""
    batch, in_dim = x.shape
    out_dim, in_dim_w = w_hat.shape
    assert in_dim == in_dim_w and m_hat.shape == w_hat.shape
    out_dtype = x.dtype

    # --- hardware-granularity padding only (NOT to tile caps) --------------
    B = _round_up(batch, 8)     # sublane
    K = _round_up(in_dim, 128)  # lane (contraction dim of both operands)
    N = _round_up(out_dim, 128) # lane of the output (dense stores)

    if (B, K) != (batch, in_dim):
        x_p = jnp.pad(x, ((0, B - batch), (0, K - in_dim)))
    else:
        x_p = x
    if (N, K) != (out_dim, in_dim):
        pad_w = ((0, N - out_dim), (0, K - in_dim))
        w_hat_p = jnp.pad(w_hat, pad_w)
        m_hat_p = jnp.pad(m_hat, pad_w)
    else:
        w_hat_p, m_hat_p = w_hat, m_hat

    # --- path selection ------------------------------------------------------
    fused_bytes = 4 * (B * K + 3 * N * K + B * N)   # x, W_hat, M_hat, w tmp, y
    resident_w_bytes = 2 * N * K * 4                # double-buffered w_eff
    if force_path is None:
        if fused_bytes <= _FUSED_BUDGET:
            path = "fused"
        elif resident_w_bytes <= _RESIDENT_W_BUDGET:
            path = "resident"
        else:
            path = "tiled"
    else:
        assert force_path in ("fused", "resident", "tiled")
        path = force_path

    # ======================= path "fused" (tiny-shape) =======================
    if path == "fused":
        y_p = pl.pallas_call(
            _nac_fused_kernel,
            out_shape=jax.ShapeDtypeStruct((B, N), out_dtype),
            grid_spec=pltpu.PrefetchScalarGridSpec(
                num_scalar_prefetch=0,
                grid=(1,),
                in_specs=[
                    pl.BlockSpec((B, K), lambda i: (0, 0)),
                    pl.BlockSpec((N, K), lambda i: (0, 0)),
                    pl.BlockSpec((N, K), lambda i: (0, 0)),
                ],
                out_specs=pl.BlockSpec((B, N), lambda i: (0, 0)),
            ),
            compiler_params=pltpu.CompilerParams(
                vmem_limit_bytes=_VMEM_LIMIT),
        )(x_p, w_hat_p, m_hat_p)
        return y_p[:batch, :out_dim]

    # ================= pass 1: w_eff = tanh(W_hat)*sigmoid(M_hat) ============
    # Pure streaming elementwise pass over the original (N, K) layout with
    # large lane-dense blocks (3 arrays x 2 buffers kept under budget).
    bk = _pick_tile(K, 2048, 128)
    bn_cap = max(8, _VMEM_BUDGET // (3 * 2 * 4 * bk))
    bn = _pick_tile(N, min(bn_cap, 1024), 8)
    w_eff = pl.pallas_call(
        _nac_weight_kernel,
        out_shape=jax.ShapeDtypeStruct((N, K), jnp.float32),
        grid_spec=pltpu.PrefetchScalarGridSpec(
            num_scalar_prefetch=0,
            grid=(N // bn, K // bk),
            in_specs=[
                pl.BlockSpec((bn, bk), lambda n, k: (n, k)),
                pl.BlockSpec((bn, bk), lambda n, k: (n, k)),
            ],
            out_specs=pl.BlockSpec((bn, bk), lambda n, k: (n, k)),
        ),
        compiler_params=pltpu.CompilerParams(
            dimension_semantics=("parallel", "parallel"),
            vmem_limit_bytes=_VMEM_LIMIT),
    )(w_hat_p, m_hat_p)

    # ======================== path "resident" ================================
    if path == "resident":
        # W held in VMEM (constant block index -> one DMA); only x / y stream.
        per_row_bytes = 2 * 4 * (K + N)              # x tile + y tile, 2 bufs
        budget_tm = (_VMEM_BUDGET - resident_w_bytes) // max(per_row_bytes, 1)
        tm_cap_eff = max(8, min(tm_cap, (budget_tm // 8) * 8))
        tm = _pick_tile(B, tm_cap_eff, 8)
        y_p = pl.pallas_call(
            _nac_matmul_resident_kernel,
            out_shape=jax.ShapeDtypeStruct((B, N), out_dtype),
            grid_spec=pltpu.PrefetchScalarGridSpec(
                num_scalar_prefetch=0,
                grid=(B // tm,),
                in_specs=[
                    pl.BlockSpec((tm, K), lambda i: (i, 0)),
                    pl.BlockSpec((N, K), lambda i: (0, 0)),   # fetched once
                ],
                out_specs=pl.BlockSpec((tm, N), lambda i: (i, 0)),
            ),
            compiler_params=pltpu.CompilerParams(
                dimension_semantics=("parallel",),
                vmem_limit_bytes=_VMEM_LIMIT),
        )(x_p, w_eff)
        return y_p[:batch, :out_dim]

    # ========================= path "tiled" (general) ========================
    tm = _pick_tile(B, min(tm_cap, 256), 8)
    tn = _pick_tile(N, max(tn_cap, 128), 128)
    if K % 256 == 0 and tk_cap >= 256:
        tk = _pick_tile(K, tk_cap, 256)
    else:
        tk = _pick_tile(K, max(tk_cap, 128), 128)

    if out_dtype == jnp.float32:
        kernel = _nac_matmul_tiled_f32_kernel
        scratch = []
    else:
        kernel = _nac_matmul_tiled_acc_kernel
        scratch = [pltpu.VMEM((tm, tn), jnp.float32)]

    y_p = pl.pallas_call(
        kernel,
        out_shape=jax.ShapeDtypeStruct((B, N), out_dtype),
        grid_spec=pltpu.PrefetchScalarGridSpec(
            num_scalar_prefetch=0,
            grid=(B // tm, N // tn, K // tk),
            in_specs=[
                pl.BlockSpec((tm, tk), lambda i, j, k: (i, k)),
                pl.BlockSpec((tn, tk), lambda i, j, k: (j, k)),
            ],
            out_specs=pl.BlockSpec((tm, tn), lambda i, j, k: (i, j)),
            scratch_shapes=scratch,
        ),
        compiler_params=pltpu.CompilerParams(
            dimension_semantics=("parallel", "parallel", "arbitrary"),
            vmem_limit_bytes=_VMEM_LIMIT),
    )(x_p, w_eff)
    return y_p[:batch, :out_dim]


def kaiming_uniform(key, out_dim, in_dim, a=math.sqrt(5), dtype=jnp.float32):
    # torch.nn.init.kaiming_uniform_ with a=sqrt(5): bound = 1/sqrt(fan_in)
    fan_in = in_dim
    gain = math.sqrt(2.0 / (1.0 + a * a))
    bound = gain * math.sqrt(3.0 / fan_in)
    return jax.random.uniform(
        key, (out_dim, in_dim), dtype=dtype, minval=-bound, maxval=bound
    )


if __name__ == "__main__":
    def run_case(idx, batch, in_dim, out_dim, force_path=None, **caps):
        k = jax.random.fold_in(jax.random.PRNGKey(0), idx)
        kx, kwh, kmh = jax.random.split(k, 3)
        x = jax.random.normal(kx, (batch, in_dim), dtype=jnp.float32)
        w_hat = kaiming_uniform(kwh, out_dim, in_dim)
        m_hat = kaiming_uniform(kmh, out_dim, in_dim)

        y = nac_forward(x, w_hat, m_hat, force_path=force_path, **caps)
        jax.block_until_ready(y)

        # Reference (same math as the PyTorch module), full-precision matmul.
        w_ref = jnp.tanh(w_hat) * jax.nn.sigmoid(m_hat)
        y_ref = jnp.dot(x, w_ref.T, precision=lax.Precision.HIGHEST)
        assert y.shape == (batch, out_dim)
        assert jnp.allclose(y, y_ref, atol=1e-4, rtol=1e-4), (
            force_path, float(jnp.max(jnp.abs(y - y_ref))))

    # Primary small case (auto path -> fully fused single kernel).
    run_case(0, batch=8, in_dim=32, out_dim=16)
    # Exercise the W-resident batch-streaming path (multi-step batch grid).
    run_case(1, batch=32, in_dim=32, out_dim=16,
             force_path="resident", tm_cap=8)
    # Exercise the general tiled-reduction path (multi-tile M/N/K grid).
    run_case(2, batch=16, in_dim=300, out_dim=200,
             force_path="tiled", tm_cap=8, tn_cap=128, tk_cap=128)

    print("KERNEL_OK")
</pallas_src>

<mosaic_0001>
module attributes {stable_mosaic.version = 11 : i64} {
  func.func @_nac_fused_kernel(%arg0: i32, %arg1: memref<8x128xf32, #tpu.memory_space<vmem>>, %arg2: memref<128x128xf32, #tpu.memory_space<vmem>>, %arg3: memref<128x128xf32, #tpu.memory_space<vmem>>, %arg4: memref<8x128xf32, #tpu.memory_space<vmem>>) attributes {dimension_semantics = [#tpu.dimension_semantics<arbitrary>], iteration_bounds = array<i64: 1>, scalar_prefetch = 0 : i64, scratch_operands = 0 : i64, tpu.core_type = #tpu.core_type<tc>, window_params = [{pipeline_mode = #tpu.pipeline_mode<synchronous>, transform_indices = @transform_0, window_bounds = array<i64: 8, 128>}, {pipeline_mode = #tpu.pipeline_mode<synchronous>, transform_indices = @transform_1, window_bounds = array<i64: 128, 128>}, {pipeline_mode = #tpu.pipeline_mode<synchronous>, transform_indices = @transform_2, window_bounds = array<i64: 128, 128>}, {pipeline_mode = #tpu.pipeline_mode<synchronous>, transform_indices = @transform_3, window_bounds = array<i64: 8, 128>}]} {
    %c0 = arith.constant 0 : index
    %c0_0 = arith.constant 0 : index
    %0 = vector.load %arg2[%c0, %c0_0] : memref<128x128xf32, #tpu.memory_space<vmem>>, vector<128x128xf32>
    %1 = math.tanh %0 : vector<128x128xf32>
    %c0_1 = arith.constant 0 : index
    %c0_2 = arith.constant 0 : index
    %2 = vector.load %arg3[%c0_1, %c0_2] : memref<128x128xf32, #tpu.memory_space<vmem>>, vector<128x128xf32>
    %3 = arith.negf %2 : vector<128x128xf32>
    %4 = math.exp %3 : vector<128x128xf32>
    %cst = arith.constant 1.000000e+00 : f32
    %5 = vector.broadcast %cst : f32 to vector<128x128xf32>
    %6 = arith.addf %5, %4 : vector<128x128xf32>
    %7 = arith.divf %5, %6 : vector<128x128xf32>
    %8 = arith.mulf %1, %7 : vector<128x128xf32>
    %c0_3 = arith.constant 0 : index
    %c0_4 = arith.constant 0 : index
    %9 = vector.load %arg1[%c0_3, %c0_4] : memref<8x128xf32, #tpu.memory_space<vmem>>, vector<8x128xf32>
    %cst_5 = arith.constant dense<0.000000e+00> : vector<8x128xf32>
    %10 = tpu.matmul %9, %8, %cst_5 {dimension_numbers = #tpu.dot_dimension_numbers<[1], [1], [0], [0], [0, 0, 1, 0], [], []>} : vector<8x128xf32>, vector<128x128xf32>, vector<8x128xf32> -> vector<8x128xf32>
    %c0_6 = arith.constant 0 : index
    %c0_7 = arith.constant 0 : index
    %11 = vector.load %arg4[%c0_6, %c0_7] : memref<8x128xf32, #tpu.memory_space<vmem>>, vector<8x128xf32>
    tpu.vector_store %arg4[%c0_6, %c0_7], %10 {strides = array<i32>} : memref<8x128xf32, #tpu.memory_space<vmem>>, vector<8x128xf32>,
    return
  }
  func.func @transform_0(%arg0: i32) -> (i32, i32) {
    %c0_i32 = arith.constant 0 : i32
    %c0_i32_0 = arith.constant 0 : i32
    %c0_i32_1 = arith.constant 0 : i32
    return %c0_i32, %c0_i32_0 : i32, i32
  }
  func.func @transform_1(%arg0: i32) -> (i32, i32) {
    %c0_i32 = arith.constant 0 : i32
    %c0_i32_0 = arith.constant 0 : i32
    %c0_i32_1 = arith.constant 0 : i32
    return %c0_i32, %c0_i32_0 : i32, i32
  }
  func.func @transform_2(%arg0: i32) -> (i32, i32) {
    %c0_i32 = arith.constant 0 : i32
    %c0_i32_0 = arith.constant 0 : i32
    %c0_i32_1 = arith.constant 0 : i32
    return %c0_i32, %c0_i32_0 : i32, i32
  }
  func.func @transform_3(%arg0: i32) -> (i32, i32) {
    %c0_i32 = arith.constant 0 : i32
    %c0_i32_0 = arith.constant 0 : i32
    %c0_i32_1 = arith.constant 0 : i32
    return %c0_i32, %c0_i32_0 : i32, i32
  }
}

</mosaic_0001>

<llo_original>
// kernel: tpu_custom_call.1
$region0: #{tpu_custom_call.1}
  #allocation0 [shape = 'u32[]', space=smem, size = 0x4, offset = 0x4, fixed_abs, tag = 'smem constant byte address 0x4 - core index']
  #allocation1 [shape = 'u32[144,128]{1,0:T(1,128)}', space=vmem, size = 0x12000, scoped, tag = 'internal scratch']
  %s0 = inlined_call_operand.hbm [shape: f32[8,128], index: 0, kind: input, shape index: {}]
  %s1 = inlined_call_operand.hbm [shape: f32[128,128], index: 1, kind: input, shape index: {}]
  %s2 = inlined_call_operand.hbm [shape: f32[128,128], index: 2, kind: input, shape index: {}]
  %s3 = inlined_call_operand.hbm [shape: f32[8,128], index: 3, kind: output, shape index: {}]
  %s4 = sld [smem:[#allocation0]]
  $region34: #{tpu_custom_call.1} parent=0
    _
  %s6 = ssub.s32 1, %s4
  %s7 = scalar_select 0, %s6, %s4
  $region1: #{tpu_custom_call.1} parent=0
    #allocation2 [shape = 'u8[4096]{0}', space=vmem, size = 0x1000, scoped, tag = 'input window, operand 0, single buffered']
    #allocation3 [shape = 's32[1]{0}', space=sflag, size = 0x4, scoped, tag = 'scoped memory for tpu_custom_call.1']
    #allocation4 [shape = 's32[1]{0}', space=sflag, size = 0x4, scoped, tag = 'scoped memory for tpu_custom_call.1']
    #allocation5 [shape = 'u8[65536]{0}', space=vmem, size = 0x10000, scoped, tag = 'input window, operand 1, single buffered']
    #allocation6 [shape = 's32[1]{0}', space=sflag, size = 0x4, scoped, tag = 'scoped memory for tpu_custom_call.1']
    #allocation7 [shape = 'u8[65536]{0}', space=vmem, size = 0x10000, scoped, tag = 'input window, operand 2, single buffered']
    #allocation8 [shape = 'u8[4096]{0}', space=vmem, size = 0x1000, scoped, tag = 'output window, operand 0, single buffered']
    %8 = vsyncpa [#allocation3], 0
    %9 = vsyncpa [#allocation6], 0
    %10 = vsyncpa [#allocation4], 0
    // Predicated region
    $region2: #{tpu_custom_call.1} parent=1 // pred_check
      _
    $region3: #{tpu_custom_call.1} parent=1 // pred_check_branch
      %12 = sbr.rel (0) target = $region5
    $region4: #{tpu_custom_call.1} parent=1 // pred_region
      %s14 = ssub.s32 128, 128
      %15 = vsyncadd [#allocation3], %s14
      %s17 = sshll.u32 [#allocation2], 4
      %s18 = int_to_ptr.vmem [resolvable:$true] %s17
      %20 = dma.hbm_to_vmem [thread:$0]  %s0, 128, %s18, [#allocation3]
    $region5: #{tpu_custom_call.1} parent=1 // pred_fallthru
      _
    // Predicated region
    $region6: #{tpu_custom_call.1} parent=1 // pred_check
      _
    $region7: #{tpu_custom_call.1} parent=1 // pred_check_branch
      %22 = sbr.rel (0) target = $region9
    $region8: #{tpu_custom_call.1} parent=1 // pred_region
      %s24 = ssub.s32 2048, 2048
      %25 = vsyncadd [#allocation6], %s24
      %s26 = sshll.u32 [#allocation5], 4
      %s27 = int_to_ptr.vmem [resolvable:$true] %s26
      %32 = dma.hbm_to_vmem [thread:$0]  %s1, 2048, %s27, [#allocation6], 128, 128, 8
    $region9: #{tpu_custom_call.1} parent=1 // pred_fallthru
      _
    // Predicated region
    $region10: #{tpu_custom_call.1} parent=1 // pred_check
      _
    $region11: #{tpu_custom_call.1} parent=1 // pred_check_branch
      %34 = sbr.rel (0) target = $region13
    $region12: #{tpu_custom_call.1} parent=1 // pred_region
      %s36 = ssub.s32 2048, 2048
      %37 = vsyncadd [#allocation6], %s36
      %s38 = sshll.u32 [#allocation7], 4
      %s39 = int_to_ptr.vmem [resolvable:$true] %s38
      %44 = dma.hbm_to_vmem [thread:$0]  %s2, 2048, %s39, [#allocation6], 128, 128, 8
    $region13: #{tpu_custom_call.1} parent=1 // pred_fallthru
      _
    // Predicated region
    $region14: #{tpu_custom_call.1} parent=1 // pred_check
      _
    $region15: #{tpu_custom_call.1} parent=1 // pred_check_branch
      %46 = sbr.rel (0) target = $region17
    $region16: #{tpu_custom_call.1} parent=1 // pred_region
      %47 = dma.done [#allocation3], 128
    $region17: #{tpu_custom_call.1} parent=1 // pred_fallthru
      _
    // Predicated region
    $region18: #{tpu_custom_call.1} parent=1 // pred_check
      _
    $region19: #{tpu_custom_call.1} parent=1 // pred_check_branch
      %49 = sbr.rel (0) target = $region21
    $region20: #{tpu_custom_call.1} parent=1 // pred_region
      %50 = dma.done [#allocation6], 2048
    $region21: #{tpu_custom_call.1} parent=1 // pred_fallthru
      _
    // Predicated region
    $region22: #{tpu_custom_call.1} parent=1 // pred_check
      _
    $region23: #{tpu_custom_call.1} parent=1 // pred_check_branch
      %52 = sbr.rel (0) target = $region25
    $region24: #{tpu_custom_call.1} parent=1 // pred_region
      %53 = dma.done [#allocation6], 2048
    $region25: #{tpu_custom_call.1} parent=1 // pred_fallthru
      _
    %v54 = vld [vmem:[#allocation5] sm:$0xff]
    %v55 = vld [vmem:[#allocation5 + $0x8] sm:$0xff]
    %v56 = vld [vmem:[#allocation5 + $0x10] sm:$0xff]
    %v57 = vld [vmem:[#allocation5 + $0x18] sm:$0xff]
    %v58 = vld [vmem:[#allocation5 + $0x20] sm:$0xff]
    %v59 = vld [vmem:[#allocation5 + $0x28] sm:$0xff]
    %v60 = vld [vmem:[#allocation5 + $0x30] sm:$0xff]
    %v61 = vld [vmem:[#allocation5 + $0x38] sm:$0xff]
    %v62 = vld [vmem:[#allocation5 + $0x40] sm:$0xff]
    %v63 = vld [vmem:[#allocation5 + $0x48] sm:$0xff]
    %v64 = vld [vmem:[#allocation5 + $0x50] sm:$0xff]
    %v65 = vld [vmem:[#allocation5 + $0x58] sm:$0xff]
    %v66 = vld [vmem:[#allocation5 + $0x60] sm:$0xff]
    %v67 = vld [vmem:[#allocation5 + $0x68] sm:$0xff]
    %v68 = vld [vmem:[#allocation5 + $0x70] sm:$0xff]
    %v69 = vld [vmem:[#allocation5 + $0x78] sm:$0xff]
    %v70 = vtanh.pop %v54
    %v71 = vtanh.pop %v55
    %v72 = vtanh.pop %v56
    %v73 = vtanh.pop %v57
    %v74 = vtanh.pop %v58
    %v75 = vtanh.pop %v59
    %v76 = vtanh.pop %v60
    %v77 = vtanh.pop %v61
    %v78 = vtanh.pop %v62
    %v79 = vtanh.pop %v63
    %v80 = vtanh.pop %v64
    %v81 = vtanh.pop %v65
    %v82 = vtanh.pop %v66
    %v83 = vtanh.pop %v67
    %v84 = vtanh.pop %v68
    %v85 = vtanh.pop %v69
    %v86 = vld [vmem:[#allocation7] sm:$0xff]
    %v87 = vld [vmem:[#allocation7 + $0x8] sm:$0xff]
    %v88 = vld [vmem:[#allocation7 + $0x10] sm:$0xff]
    %v89 = vld [vmem:[#allocation7 + $0x18] sm:$0xff]
    %v90 = vld [vmem:[#allocation7 + $0x20] sm:$0xff]
    %v91 = vld [vmem:[#allocation7 + $0x28] sm:$0xff]
    %v92 = vld [vmem:[#allocation7 + $0x30] sm:$0xff]
    %v93 = vld [vmem:[#allocation7 + $0x38] sm:$0xff]
    %v94 = vld [vmem:[#allocation7 + $0x40] sm:$0xff]
    %v95 = vld [vmem:[#allocation7 + $0x48] sm:$0xff]
    %v96 = vld [vmem:[#allocation7 + $0x50] sm:$0xff]
    %v97 = vld [vmem:[#allocation7 + $0x58] sm:$0xff]
    %v98 = vld [vmem:[#allocation7 + $0x60] sm:$0xff]
    %v99 = vld [vmem:[#allocation7 + $0x68] sm:$0xff]
    %v100 = vld [vmem:[#allocation7 + $0x70] sm:$0xff]
    %v101 = vld [vmem:[#allocation7 + $0x78] sm:$0xff]
    %v102 = vxor.u32 %v86, 2147483648
    %v103 = vxor.u32 %v87, 2147483648
    %v104 = vxor.u32 %v88, 2147483648
    %v105 = vxor.u32 %v89, 2147483648
    %v106 = vxor.u32 %v90, 2147483648
    %v107 = vxor.u32 %v91, 2147483648
    %v108 = vxor.u32 %v92, 2147483648
    %v109 = vxor.u32 %v93, 2147483648
    %v110 = vxor.u32 %v94, 2147483648
    %v111 = vxor.u32 %v95, 2147483648
    %v112 = vxor.u32 %v96, 2147483648
    %v113 = vxor.u32 %v97, 2147483648
    %v114 = vxor.u32 %v98, 2147483648
    %v115 = vxor.u32 %v99, 2147483648
    %v116 = vxor.u32 %v100, 2147483648
    %v117 = vxor.u32 %v101, 2147483648
    %v118 = vmul.f32 %v102, 1.442695
    %v119 = vpow.pop %v118
    %v120 = vmul.f32 %v103, 1.442695
    %v121 = vpow.pop %v120
    %v122 = vmul.f32 %v104, 1.442695
    %v123 = vpow.pop %v122
    %v124 = vmul.f32 %v105, 1.442695
    %v125 = vpow.pop %v124
    %v126 = vmul.f32 %v106, 1.442695
    %v127 = vpow.pop %v126
    %v128 = vmul.f32 %v107, 1.442695
    %v129 = vpow.pop %v128
    %v130 = vmul.f32 %v108, 1.442695
    %v131 = vpow.pop %v130
    %v132 = vmul.f32 %v109, 1.442695
    %v133 = vpow.pop %v132
    %v134 = vmul.f32 %v110, 1.442695
    %v135 = vpow.pop %v134
    %v136 = vmul.f32 %v111, 1.442695
    %v137 = vpow.pop %v136
    %v138 = vmul.f32 %v112, 1.442695
    %v139 = vpow.pop %v138
    %v140 = vmul.f32 %v113, 1.442695
    %v141 = vpow.pop %v140
    %v142 = vmul.f32 %v114, 1.442695
    %v143 = vpow.pop %v142
    %v144 = vmul.f32 %v115, 1.442695
    %v145 = vpow.pop %v144
    %v146 = vmul.f32 %v116, 1.442695
    %v147 = vpow.pop %v146
    %v148 = vmul.f32 %v117, 1.442695
    %v149 = vpow.pop %v148
    %v150 = vadd.f32 %v119, 1.0
    %v151 = vadd.f32 %v121, 1.0
    %v152 = vadd.f32 %v123, 1.0
    %v153 = vadd.f32 %v125, 1.0
    %v154 = vadd.f32 %v127, 1.0
    %v155 = vadd.f32 %v129, 1.0
    %v156 = vadd.f32 %v131, 1.0
    %v157 = vadd.f32 %v133, 1.0
    %v158 = vadd.f32 %v135, 1.0
    %v159 = vadd.f32 %v137, 1.0
    %v160 = vadd.f32 %v139, 1.0
    %v161 = vadd.f32 %v141, 1.0
    %v162 = vadd.f32 %v143, 1.0
    %v163 = vadd.f32 %v145, 1.0
    %v164 = vadd.f32 %v147, 1.0
    %v165 = vadd.f32 %v149, 1.0
    %v166 = vrcp.pop %v150
    %v167 = vmul.f32 1.0, %v166
    %v168 = vrcp.pop %v151
    %v169 = vmul.f32 1.0, %v168
    %v170 = vrcp.pop %v152
    %v171 = vmul.f32 1.0, %v170
    %v172 = vrcp.pop %v153
    %v173 = vmul.f32 1.0, %v172
    %v174 = vrcp.pop %v154
    %v175 = vmul.f32 1.0, %v174
    %v176 = vrcp.pop %v155
    %v177 = vmul.f32 1.0, %v176
    %v178 = vrcp.pop %v156
    %v179 = vmul.f32 1.0, %v178
    %v180 = vrcp.pop %v157
    %v181 = vmul.f32 1.0, %v180
    %v182 = vrcp.pop %v158
    %v183 = vmul.f32 1.0, %v182
    %v184 = vrcp.pop %v159
    %v185 = vmul.f32 1.0, %v184
    %v186 = vrcp.pop %v160
    %v187 = vmul.f32 1.0, %v186
    %v188 = vrcp.pop %v161
    %v189 = vmul.f32 1.0, %v188
    %v190 = vrcp.pop %v162
    %v191 = vmul.f32 1.0, %v190
    %v192 = vrcp.pop %v163
    %v193 = vmul.f32 1.0, %v192
    %v194 = vrcp.pop %v164
    %v195 = vmul.f32 1.0, %v194
    %v196 = vrcp.pop %v165
    %v197 = vmul.f32 1.0, %v196
    %v198 = vmul.f32 %v70, %v167
    %v199 = vmul.f32 %v71, %v169
    %v200 = vmul.f32 %v72, %v171
    %v201 = vmul.f32 %v73, %v173
    %v202 = vmul.f32 %v74, %v175
    %v203 = vmul.f32 %v75, %v177
    %v204 = vmul.f32 %v76, %v179
    %v205 = vmul.f32 %v77, %v181
    %v206 = vmul.f32 %v78, %v183
    %v207 = vmul.f32 %v79, %v185
    %v208 = vmul.f32 %v80, %v187
    %v209 = vmul.f32 %v81, %v189
    %v210 = vmul.f32 %v82, %v191
    %v211 = vmul.f32 %v83, %v193
    %v212 = vmul.f32 %v84, %v195
    %v213 = vmul.f32 %v85, %v197
    %v214 = vld [vmem:[#allocation2] sm:$0xff]
    %215 = vmatprep.subr.mxu0 0.0
    %216 = vmatpush1.xpose.msra.mxu0 %v198
    %217 = vmatprep.subr.mxu0 0.0
    %218 = vmatpush1.xpose.msra.mxu0 %v199
    %219 = vmatprep.subr.mxu0 0.0
    %220 = vmatpush1.xpose.msra.mxu0 %v200
    %221 = vmatprep.subr.mxu0 0.0
    %222 = vmatpush1.xpose.msra.mxu0 %v201
    %223 = vmatprep.subr.mxu0 0.0
    %224 = vmatpush1.xpose.msra.mxu0 %v202
    %225 = vmatprep.subr.mxu0 0.0
    %226 = vmatpush1.xpose.msra.mxu0 %v203
    %227 = vmatprep.subr.mxu0 0.0
    %228 = vmatpush1.xpose.msra.mxu0 %v204
    %229 = vmatprep.subr.mxu0 0.0
    %230 = vmatpush1.xpose.msra.mxu0 %v205
    %231 = vmatprep.subr.mxu0 0.0
    %232 = vmatpush1.xpose.msra.mxu0 %v206
    %233 = vmatprep.subr.mxu0 0.0
    %234 = vmatpush1.xpose.msra.mxu0 %v207
    %235 = vmatprep.subr.mxu0 0.0
    %236 = vmatpush1.xpose.msra.mxu0 %v208
    %237 = vmatprep.subr.mxu0 0.0
    %238 = vmatpush1.xpose.msra.mxu0 %v209
    %239 = vmatprep.subr.mxu0 0.0
    %240 = vmatpush1.xpose.msra.mxu0 %v210
    %241 = vmatprep.subr.mxu0 0.0
    %242 = vmatpush1.xpose.msra.mxu0 %v211
    %243 = vmatprep.subr.mxu0 0.0
    %244 = vmatpush1.xpose.msra.mxu0 %v212
    %245 = vmatprep.subr.mxu0 0.0
    %246 = vmatpush1.xpose.msra.mxu0 %v213
    %247 = vmatprep.subr.mxu0 0.0
    %248 = vmatpush1.xpose.msra.mxu0 0.0
    %249 = vmatprep.subr.mxu0 0.0
    %250 = vmatpush1.xpose.msra.mxu0 0.0
    %251 = vmatprep.subr.mxu0 0.0
    %252 = vmatpush1.xpose.msra.mxu0 0.0
    %253 = vmatprep.subr.mxu0 0.0
    %254 = vmatpush1.xpose.msra.mxu0 0.0
    %255 = vmatprep.subr.mxu0 0.0
    %256 = vmatpush1.xpose.msra.mxu0 0.0
    %257 = vmatprep.subr.mxu0 0.0
    %258 = vmatpush1.xpose.msra.mxu0 0.0
    %259 = vmatprep.subr.mxu0 0.0
    %260 = vmatpush1.xpose.msra.mxu0 0.0
    %261 = vmatprep.subr.mxu0 0.0
    %262 = vmatpush1.xpose.msra.mxu0 0.0
    %263 = vmatprep.subr.mxu0 0.0
    %264 = vmatpush1.xpose.msra.mxu0 0.0
    %265 = vmatprep.subr.mxu0 0.0
    %266 = vmatpush1.xpose.msra.mxu0 0.0
    %267 = vmatprep.subr.mxu0 0.0
    %268 = vmatpush1.xpose.msra.mxu0 0.0
    %269 = vmatprep.subr.mxu0 0.0
    %270 = vmatpush1.xpose.msra.mxu0 0.0
    %271 = vmatprep.subr.mxu0 0.0
    %272 = vmatpush1.xpose.msra.mxu0 0.0
    %273 = vmatprep.subr.mxu0 0.0
    %274 = vmatpush1.xpose.msra.mxu0 0.0
    %275 = vmatprep.subr.mxu0 0.0
    %276 = vmatpush1.xpose.msra.mxu0 0.0
    %277 = vmatprep.subr.mxu0 0.0
    %278 = vmatpush1.xpose.msra.mxu0 0.0
    %279 = vmatprep.mubr.f32.mxu0 0.0
    %280 = vmatmul.mubr.f32.gmra.mrb[0].mxu0 %v214
    %v281 = vpop.f32.mrb[0].mxu0
    %v282 = vadd.f32 0.0, %v281
    %v283 = vpop.f32.mrb[0].mxu0
    %284 = vdwg.mxu0
    %285 = vst [vmem:[#allocation8] sm:$0xff] %v282
    // Predicated region
    $region26: #{tpu_custom_call.1} parent=1 // pred_check
      _
    $region27: #{tpu_custom_call.1} parent=1 // pred_check_branch
      %287 = sbr.rel (0) target = $region29
    $region28: #{tpu_custom_call.1} parent=1 // pred_region
      %s289 = ssub.s32 128, 128
      %290 = vsyncadd [#allocation4], %s289
      %s292 = sshll.u32 [#allocation8], 4
      %s293 = int_to_ptr.vmem [resolvable:$true] %s292
      %295 = dma.vmem_to_hbm [thread:$0]  %s293, 128, %s3, [#allocation4]
    $region29: #{tpu_custom_call.1} parent=1 // pred_fallthru
      _
    // Predicated region
    $region30: #{tpu_custom_call.1} parent=1 // pred_check
      _
    $region31: #{tpu_custom_call.1} parent=1 // pred_check_branch
      %297 = sbr.rel (0) target = $region33
    $region32: #{tpu_custom_call.1} parent=1 // pred_region
      %298 = dma.done [#allocation4], 128
    $region33: #{tpu_custom_call.1} parent=1 // pred_fallthru
      _
    %299 = vsyncpa [#allocation3], 1
    %300 = vsyncpa [#allocation6], 1
    %301 = vsyncpa [#allocation4], 1

</llo_original>
